<compile_context>
chip_gen: v7x
topology: tpu7x:2x2x1
jax: 0.10.0
libtpu: 0.0.40
codegen_flags: <defaults>
</compile_context>

<pallas_src>
import functools

import jax
import jax.numpy as jnp
from jax import lax
from jax.experimental import pallas as pl
from jax.experimental.pallas import tpu as pltpu


def _round_up(x, m):
    return (x + m - 1) // m * m


def _cdiv(a, b):
    return -(-a // b)


def vision_embed_kernel(x_ref, w_ref, pos_ref, o_ref):
    # x_ref:   (TM, Kp)  row tile of flattened patches (compute dtype)
    # w_ref:   (Kp, Dp)  projection weight, resident across all grid steps
    # pos_ref: (TM, Dp)  positional embedding (+ folded conv bias) for this tile
    # o_ref:   (TM, Dp)  output tile
    acc = jnp.dot(x_ref[...], w_ref[...], preferred_element_type=jnp.float32)
    acc = acc + pos_ref[...].astype(jnp.float32)
    o_ref[...] = acc.astype(o_ref.dtype)


def vision_embedding_forward(x, conv_w, conv_b, pos_embed, patch_size,
                             compute_dtype=jnp.bfloat16, row_tile_target=512):
    """x: [B, C, H, W] (NCHW). conv_w: [D, C, ph, pw]. conv_b: [D].
    pos_embed: [1, P, D]. Returns [B, P, D] (prepend_cls_token=False path)."""
    B, C, H, W = x.shape
    ph, pw = patch_size
    assert H % ph == 0 and W % pw == 0
    Hp, Wp = H // ph, W // pw
    P = Hp * Wp
    D = conv_w.shape[0]
    K = C * ph * pw

    # --- tiling / padding choices -------------------------------------------
    SUB = 16                       # sublane alignment valid for f32 (8) and bf16 (16)
    Kp = _round_up(K, 128)         # lane-aligned contraction dim
    Dp = _round_up(D, 128)         # lane-dense output width (unmasked vst)
    Pp = _round_up(P, SUB)

    if Pp < row_tile_target:
        # Small patch count: fuse several images into one M tile (B folded into M).
        imgs_per_tile = max(1, min(B, row_tile_target // Pp))
        TM = Pp * imgs_per_tile
        n_pos_blocks = 1
    else:
        # Large patch count: tile rows within each image, with TM | Pp so the
        # positional-embedding blocks line up with the row tiles.
        imgs_per_tile = 1
        n_per_img = _cdiv(Pp, row_tile_target)
        TM = _round_up(_cdiv(Pp, n_per_img), SUB)
        Pp = TM * n_per_img
        n_pos_blocks = n_per_img

    R = B * Pp
    Rp = _round_up(R, TM)
    n_tiles = Rp // TM

    # --- glue: NCHW image -> flattened non-overlapping patches [B, P, K] -----
    patches = x.reshape(B, C, Hp, ph, Wp, pw)
    patches = jnp.transpose(patches, (0, 2, 4, 1, 3, 5))      # [B, Hp, Wp, C, ph, pw]
    patches = patches.reshape(B, P, K).astype(compute_dtype)
    patches = jnp.pad(patches, ((0, 0), (0, Pp - P), (0, Kp - K)))
    patches = patches.reshape(B * Pp, Kp)
    if Rp > R:
        patches = jnp.pad(patches, ((0, Rp - R), (0, 0)))

    # Projection weight [D, C, ph, pw] -> [Kp, Dp]  (in a real model this is
    # prepared once at parameter-load time, outside the jitted forward).
    w = conv_w.reshape(D, K).T
    w = jnp.pad(w, ((0, Kp - K), (0, Dp - D))).astype(compute_dtype)

    # Fold conv bias into the positional embedding, pad to [*, Dp].
    pos = pos_embed.reshape(P, D) + conv_b[None, :]
    pos = jnp.pad(pos, ((0, Pp - P), (0, Dp - D))).astype(compute_dtype)
    if imgs_per_tile > 1:
        pos = jnp.tile(pos, (imgs_per_tile, 1))               # [TM, Dp]

    cd_bytes = jnp.dtype(compute_dtype).itemsize
    out_bytes = jnp.dtype(x.dtype).itemsize
    cost = pl.CostEstimate(
        flops=2 * B * P * K * D,
        transcendentals=0,
        bytes_accessed=(Rp * Kp + Kp * Dp + n_tiles * TM * Dp) * cd_bytes
                       + Rp * Dp * out_bytes,
    )

    out = pl.pallas_call(
        vision_embed_kernel,
        out_shape=jax.ShapeDtypeStruct((Rp, Dp), x.dtype),
        grid_spec=pltpu.PrefetchScalarGridSpec(
            num_scalar_prefetch=0,
            grid=(n_tiles,),
            in_specs=[
                pl.BlockSpec((TM, Kp), lambda i: (i, 0)),
                pl.BlockSpec((Kp, Dp), lambda i: (0, 0)),
                pl.BlockSpec((TM, Dp), lambda i: (i % n_pos_blocks, 0)),
            ],
            out_specs=pl.BlockSpec((TM, Dp), lambda i: (i, 0)),
        ),
        compiler_params=pltpu.CompilerParams(
            dimension_semantics=("parallel",),
            vmem_limit_bytes=64 * 1024 * 1024),
        cost_estimate=cost,
    )(patches, w, pos)

    out = out[: B * Pp].reshape(B, Pp, Dp)[:, :P, :D]
    return out


def reference_forward(x, conv_w, conv_b, pos_embed, patch_size):
    """Pure-JAX reference matching the PyTorch module semantics exactly."""
    ph, pw = patch_size
    y = lax.conv_general_dilated(
        x, conv_w, window_strides=(ph, pw), padding="VALID",
        dimension_numbers=("NCHW", "OIHW", "NCHW"))           # [B, D, Hp, Wp]
    y = y + conv_b.reshape(1, -1, 1, 1)
    B, D, Hp, Wp = y.shape
    y = y.reshape(B, D, Hp * Wp).transpose(0, 2, 1)           # [B, P, D]
    return y + pos_embed


if __name__ == "__main__":
    # Small shapes consistent with the module: img_size=16, patch_size=4,
    # in_chans=4, embed_dim=32, prepend_cls_token=False  ->  P=16, K=64.
    B, C, H, W = 2, 4, 16, 16
    ph = pw = 4
    D = 32
    P = (H // ph) * (W // pw)

    key = jax.random.PRNGKey(0)
    kx, kw, kb, kp = jax.random.split(key, 4)
    x = jax.random.normal(kx, (B, C, H, W), dtype=jnp.float32)
    conv_w = jax.random.normal(kw, (D, C, ph, pw), dtype=jnp.float32) * 0.05
    conv_b = jax.random.normal(kb, (D,), dtype=jnp.float32) * 0.05
    # PyTorch initializes pos_embed to zeros; use random values so the add
    # path is actually exercised (a checkpoint would override it anyway).
    pos_embed = jax.random.normal(kp, (1, P, D), dtype=jnp.float32) * 0.02

    ref = reference_forward(x, conv_w, conv_b, pos_embed, (ph, pw))

    # Default perf path: bf16 matmul inputs, f32 accumulation.
    fwd_bf16 = jax.jit(functools.partial(
        vision_embedding_forward, patch_size=(ph, pw), compute_dtype=jnp.bfloat16))
    out = jax.block_until_ready(fwd_bf16(x, conv_w, conv_b, pos_embed))
    assert out.shape == (B, P, D)
    assert jnp.allclose(out, ref, atol=5e-2, rtol=5e-2), "bf16 path mismatch vs reference"

    # Strict f32 path for tight numerical validation of the kernel structure.
    fwd_f32 = jax.jit(functools.partial(
        vision_embedding_forward, patch_size=(ph, pw), compute_dtype=jnp.float32))
    out32 = jax.block_until_ready(fwd_f32(x, conv_w, conv_b, pos_embed))
    assert jnp.allclose(out32, ref, atol=1e-4, rtol=1e-4), "f32 path mismatch vs reference"

    print("KERNEL_OK")
</pallas_src>

<mosaic_0001>
module attributes {stable_mosaic.version = 11 : i64} {
  func.func @vision_embed_kernel(%arg0: i32, %arg1: memref<32x128xbf16, #tpu.memory_space<vmem>>, %arg2: memref<128x128xbf16, #tpu.memory_space<vmem>>, %arg3: memref<32x128xbf16, #tpu.memory_space<vmem>>, %arg4: memref<32x128xf32, #tpu.memory_space<vmem>>) attributes {dimension_semantics = [#tpu.dimension_semantics<parallel>], iteration_bounds = array<i64: 1>, scalar_prefetch = 0 : i64, scratch_operands = 0 : i64, tpu.core_type = #tpu.core_type<tc>, window_params = [{transform_indices = @transform_0, window_bounds = array<i64: 32, 128>}, {pipeline_mode = #tpu.pipeline_mode<synchronous>, transform_indices = @transform_1, window_bounds = array<i64: 128, 128>}, {transform_indices = @transform_2, window_bounds = array<i64: 32, 128>}, {transform_indices = @transform_3, window_bounds = array<i64: 32, 128>}]} {
    %c0 = arith.constant 0 : index
    %c0_0 = arith.constant 0 : index
    %0 = vector.load %arg1[%c0, %c0_0] : memref<32x128xbf16, #tpu.memory_space<vmem>>, vector<32x128xbf16>
    %c0_1 = arith.constant 0 : index
    %c0_2 = arith.constant 0 : index
    %1 = vector.load %arg2[%c0_1, %c0_2] : memref<128x128xbf16, #tpu.memory_space<vmem>>, vector<128x128xbf16>
    %cst = arith.constant dense<0.000000e+00> : vector<32x128xf32>
    %2 = tpu.matmul %0, %1, %cst {dimension_numbers = #tpu.dot_dimension_numbers<[1], [0], [0], [1], [0, 0, 1, 1], [], []>} : vector<32x128xbf16>, vector<128x128xbf16>, vector<32x128xf32> -> vector<32x128xf32>
    %c0_3 = arith.constant 0 : index
    %c0_4 = arith.constant 0 : index
    %3 = vector.load %arg3[%c0_3, %c0_4] : memref<32x128xbf16, #tpu.memory_space<vmem>>, vector<32x128xbf16>
    %4 = arith.extf %3 : vector<32x128xbf16> to vector<32x128xf32>
    %5 = arith.addf %2, %4 : vector<32x128xf32>
    %c0_5 = arith.constant 0 : index
    %c0_6 = arith.constant 0 : index
    %6 = vector.load %arg4[%c0_5, %c0_6] : memref<32x128xf32, #tpu.memory_space<vmem>>, vector<32x128xf32>
    tpu.vector_store %arg4[%c0_5, %c0_6], %5 {strides = array<i32>} : memref<32x128xf32, #tpu.memory_space<vmem>>, vector<32x128xf32>,
    return
  }
  func.func @transform_0(%arg0: i32) -> (i32, i32) {
    %c0_i32 = arith.constant 0 : i32
    %c0_i32_0 = arith.constant 0 : i32
    return %arg0, %c0_i32 : i32, i32
  }
  func.func @transform_1(%arg0: i32) -> (i32, i32) {
    %c0_i32 = arith.constant 0 : i32
    %c0_i32_0 = arith.constant 0 : i32
    %c0_i32_1 = arith.constant 0 : i32
    return %c0_i32, %c0_i32_0 : i32, i32
  }
  func.func @transform_2(%arg0: i32) -> (i32, i32) {
    %c1_i32 = arith.constant 1 : i32
    %c0_i32 = arith.constant 0 : i32
    %0 = arith.cmpi eq, %c1_i32, %c0_i32 : i32
    %c1_i32_0 = arith.constant 1 : i32
    %1 = arith.select %0, %c1_i32_0, %c1_i32 : i32
    %2 = arith.remsi %arg0, %1 : i32
    %c0_i32_1 = arith.constant 0 : i32
    %3 = arith.cmpi ne, %2, %c0_i32_1 : i32
    %c0_i32_2 = arith.constant 0 : i32
    %4 = arith.cmpi slt, %2, %c0_i32_2 : i32
    %c0_i32_3 = arith.constant 0 : i32
    %5 = arith.cmpi slt, %1, %c0_i32_3 : i32
    %6 = arith.xori %4, %5 : i1
    %7 = arith.andi %6, %3 : i1
    %8 = arith.addi %2, %1 : i32
    %9 = arith.select %7, %8, %2 : i32
    %c0_i32_4 = arith.constant 0 : i32
    %c0_i32_5 = arith.constant 0 : i32
    return %9, %c0_i32_4 : i32, i32
  }
  func.func @transform_3(%arg0: i32) -> (i32, i32) {
    %c0_i32 = arith.constant 0 : i32
    %c0_i32_0 = arith.constant 0 : i32
    return %arg0, %c0_i32 : i32, i32
  }
}

</mosaic_0001>

<llo_original>
// kernel: vision_embedding_forward.1
$region0: #{vision_embedding_forward.1}
  #allocation0 [shape = 'u32[]', space=smem, size = 0x4, offset = 0x4, fixed_abs, tag = 'smem constant byte address 0x4 - core index']
  #allocation1 [shape = 'u32[144,128]{1,0:T(1,128)}', space=vmem, size = 0x12000, scoped, tag = 'internal scratch']
  %s0 = inlined_call_operand.hbm [shape: bf16[32,128], index: 0, kind: input, shape index: {}]
  %s1 = inlined_call_operand.hbm [shape: bf16[128,128], index: 1, kind: input, shape index: {}]
  %s2 = inlined_call_operand.hbm [shape: bf16[32,128], index: 2, kind: input, shape index: {}]
  %s3 = inlined_call_operand.hbm [shape: f32[32,128], index: 3, kind: output, shape index: {}]
  %s4 = sld [smem:[#allocation0]]
  $region34: #{vision_embedding_forward.1} parent=0
    _
  %s6 = ssub.s32 1, %s4
  %s7 = scalar_select 0, %s6, %s4
  $region1: #{vision_embedding_forward.1} parent=0
    #allocation2 [shape = 'u8[8192]{0}', space=vmem, size = 0x2000, scoped, tag = 'input window, operand 0, single buffered']
    #allocation3 [shape = 's32[1]{0}', space=sflag, size = 0x4, scoped, tag = 'scoped memory for vision_embedding_forward.1']
    #allocation4 [shape = 's32[1]{0}', space=sflag, size = 0x4, scoped, tag = 'scoped memory for vision_embedding_forward.1']
    #allocation5 [shape = 'u8[32768]{0}', space=vmem, size = 0x8000, scoped, tag = 'input window, operand 1, single buffered']
    #allocation6 [shape = 's32[1]{0}', space=sflag, size = 0x4, scoped, tag = 'scoped memory for vision_embedding_forward.1']
    #allocation7 [shape = 'u8[8192]{0}', space=vmem, size = 0x2000, scoped, tag = 'input window, operand 2, single buffered']
    #allocation8 [shape = 'u8[16384]{0}', space=vmem, size = 0x4000, scoped, tag = 'output window, operand 0, single buffered']
    %8 = vsyncpa [#allocation3], 0
    %9 = vsyncpa [#allocation6], 0
    %10 = vsyncpa [#allocation4], 0
    // Predicated region
    $region2: #{vision_embedding_forward.1} parent=1 // pred_check
      _
    $region3: #{vision_embedding_forward.1} parent=1 // pred_check_branch
      %12 = sbr.rel (0) target = $region5
    $region4: #{vision_embedding_forward.1} parent=1 // pred_region
      %s14 = ssub.s32 256, 256
      %15 = vsyncadd [#allocation3], %s14
      %s16 = sshll.u32 [#allocation2], 4
      %s17 = int_to_ptr.vmem [resolvable:$true] %s16
      %22 = dma.hbm_to_vmem [thread:$0]  %s0, 256, %s17, [#allocation3], 64, 64, 4
    $region5: #{vision_embedding_forward.1} parent=1 // pred_fallthru
      _
    // Predicated region
    $region6: #{vision_embedding_forward.1} parent=1 // pred_check
      _
    $region7: #{vision_embedding_forward.1} parent=1 // pred_check_branch
      %24 = sbr.rel (0) target = $region9
    $region8: #{vision_embedding_forward.1} parent=1 // pred_region
      %s26 = ssub.s32 1024, 1024
      %27 = vsyncadd [#allocation6], %s26
      %s28 = sshll.u32 [#allocation5], 4
      %s29 = int_to_ptr.vmem [resolvable:$true] %s28
      %34 = dma.hbm_to_vmem [thread:$0]  %s1, 1024, %s29, [#allocation6], 64, 64, 4
    $region9: #{vision_embedding_forward.1} parent=1 // pred_fallthru
      _
    // Predicated region
    $region10: #{vision_embedding_forward.1} parent=1 // pred_check
      _
    $region11: #{vision_embedding_forward.1} parent=1 // pred_check_branch
      %36 = sbr.rel (0) target = $region13
    $region12: #{vision_embedding_forward.1} parent=1 // pred_region
      %s38 = ssub.s32 256, 256
      %39 = vsyncadd [#allocation6], %s38
      %s40 = sshll.u32 [#allocation7], 4
      %s41 = int_to_ptr.vmem [resolvable:$true] %s40
      %46 = dma.hbm_to_vmem [thread:$0]  %s2, 256, %s41, [#allocation6], 64, 64, 4
    $region13: #{vision_embedding_forward.1} parent=1 // pred_fallthru
      _
    // Predicated region
    $region14: #{vision_embedding_forward.1} parent=1 // pred_check
      _
    $region15: #{vision_embedding_forward.1} parent=1 // pred_check_branch
      %48 = sbr.rel (0) target = $region17
    $region16: #{vision_embedding_forward.1} parent=1 // pred_region
      %49 = dma.done [#allocation3], 256
    $region17: #{vision_embedding_forward.1} parent=1 // pred_fallthru
      _
    // Predicated region
    $region18: #{vision_embedding_forward.1} parent=1 // pred_check
      _
    $region19: #{vision_embedding_forward.1} parent=1 // pred_check_branch
      %51 = sbr.rel (0) target = $region21
    $region20: #{vision_embedding_forward.1} parent=1 // pred_region
      %52 = dma.done [#allocation6], 1024
    $region21: #{vision_embedding_forward.1} parent=1 // pred_fallthru
      _
    // Predicated region
    $region22: #{vision_embedding_forward.1} parent=1 // pred_check
      _
    $region23: #{vision_embedding_forward.1} parent=1 // pred_check_branch
      %54 = sbr.rel (0) target = $region25
    $region24: #{vision_embedding_forward.1} parent=1 // pred_region
      %55 = dma.done [#allocation6], 256
    $region25: #{vision_embedding_forward.1} parent=1 // pred_fallthru
      _
    %v57 = vld [vmem:[#allocation2] sm:$0xf]
    %v58 = vld [vmem:[#allocation2 + $0x4] sm:$0xf]
    %v59 = vld [vmem:[#allocation2 + $0x8] sm:$0xf]
    %v60 = vld [vmem:[#allocation2 + $0xc] sm:$0xf]
    %v61 = vld [vmem:[#allocation5] sm:$0xf]
    %v62 = vld [vmem:[#allocation5 + $0x4] sm:$0xf]
    %v63 = vld [vmem:[#allocation5 + $0x8] sm:$0xf]
    %v64 = vld [vmem:[#allocation5 + $0xc] sm:$0xf]
    %v65 = vld [vmem:[#allocation5 + $0x10] sm:$0xf]
    %v66 = vld [vmem:[#allocation5 + $0x14] sm:$0xf]
    %v67 = vld [vmem:[#allocation5 + $0x18] sm:$0xf]
    %v68 = vld [vmem:[#allocation5 + $0x1c] sm:$0xf]
    %v69 = vld [vmem:[#allocation5 + $0x20] sm:$0xf]
    %v70 = vld [vmem:[#allocation5 + $0x24] sm:$0xf]
    %v71 = vld [vmem:[#allocation5 + $0x28] sm:$0xf]
    %v72 = vld [vmem:[#allocation5 + $0x2c] sm:$0xf]
    %v73 = vld [vmem:[#allocation5 + $0x30] sm:$0xf]
    %v74 = vld [vmem:[#allocation5 + $0x34] sm:$0xf]
    %v75 = vld [vmem:[#allocation5 + $0x38] sm:$0xf]
    %v76 = vld [vmem:[#allocation5 + $0x3c] sm:$0xf]
    %v77 = vld [vmem:[#allocation7] sm:$0xf]
    %v78 = vld [vmem:[#allocation7 + $0x4] sm:$0xf]
    %v79 = vld [vmem:[#allocation7 + $0x8] sm:$0xf]
    %v80 = vld [vmem:[#allocation7 + $0xc] sm:$0xf]
    %v81 = vunpack.c.l.bf16 %v77
    %v82 = vunpack.c.l.bf16 %v78
    %v83 = vunpack.c.l.bf16 %v79
    %v84 = vunpack.c.l.bf16 %v80
    %v89 = vunpack.c.l.b16 %v57
    %v90 = vunpack.c.l.b16 %v58
    %v91 = vunpack.c.l.b16 %v59
    %v92 = vunpack.c.l.b16 %v60
    %v93 = vpack.c.b16 %v90, %v89
    %v94 = vpack.c.b16 %v92, %v91
    %v113 = vunpack.c.l.b16 %v61
    %v114 = vunpack.c.l.b16 %v62
    %v115 = vunpack.c.l.b16 %v63
    %v116 = vunpack.c.l.b16 %v64
    %v117 = vunpack.c.l.b16 %v65
    %v118 = vunpack.c.l.b16 %v66
    %v119 = vunpack.c.l.b16 %v67
    %v120 = vunpack.c.l.b16 %v68
    %v121 = vunpack.c.l.b16 %v69
    %v122 = vunpack.c.l.b16 %v70
    %v123 = vunpack.c.l.b16 %v71
    %v124 = vunpack.c.l.b16 %v72
    %v125 = vunpack.c.l.b16 %v73
    %v126 = vunpack.c.l.b16 %v74
    %v127 = vunpack.c.l.b16 %v75
    %v128 = vunpack.c.l.b16 %v76
    %v129 = vpack.c.b16 %v114, %v113
    %v130 = vpack.c.b16 %v116, %v115
    %v131 = vpack.c.b16 %v118, %v117
    %v132 = vpack.c.b16 %v120, %v119
    %v133 = vpack.c.b16 %v122, %v121
    %v134 = vpack.c.b16 %v124, %v123
    %v135 = vpack.c.b16 %v126, %v125
    %v136 = vpack.c.b16 %v128, %v127
    %145 = vmatprep.subr.bf16.mxu0 0
    %146 = vmatpush1.bf16.msra.mxu0 %v129
    %147 = vmatprep.subr.bf16.mxu0 0
    %148 = vmatpush1.bf16.msra.mxu0 %v130
    %149 = vmatprep.subr.bf16.mxu0 0
    %150 = vmatpush1.bf16.msra.mxu0 %v131
    %151 = vmatprep.subr.bf16.mxu0 0
    %152 = vmatpush1.bf16.msra.mxu0 %v132
    %153 = vmatprep.subr.bf16.mxu0 0
    %154 = vmatpush1.bf16.msra.mxu0 %v133
    %155 = vmatprep.subr.bf16.mxu0 0
    %156 = vmatpush1.bf16.msra.mxu0 %v134
    %157 = vmatprep.subr.bf16.mxu0 0
    %158 = vmatpush1.bf16.msra.mxu0 %v135
    %159 = vmatprep.subr.bf16.mxu0 0
    %160 = vmatpush1.bf16.msra.mxu0 %v136
    %161 = vmatprep.subr.bf16.mxu0 0
    %162 = vmatpush1.bf16.msra.mxu0 0
    %163 = vmatprep.subr.bf16.mxu0 0
    %164 = vmatpush1.bf16.msra.mxu0 0
    %165 = vmatprep.subr.bf16.mxu0 0
    %166 = vmatpush1.bf16.msra.mxu0 0
    %167 = vmatprep.subr.bf16.mxu0 0
    %168 = vmatpush1.bf16.msra.mxu0 0
    %169 = vmatprep.subr.bf16.mxu0 0
    %170 = vmatpush1.bf16.msra.mxu0 0
    %171 = vmatprep.subr.bf16.mxu0 0
    %172 = vmatpush1.bf16.msra.mxu0 0
    %173 = vmatprep.subr.bf16.mxu0 0
    %174 = vmatpush1.bf16.msra.mxu0 0
    %175 = vmatprep.subr.bf16.mxu0 0
    %176 = vmatpush1.bf16.msra.mxu0 0
    %177 = vmatprep.mubr.bf16.mxu0 0
    %178 = vmatmul.mubr.bf16.gmra.mrb[0].mxu0 %v93
    %v179 = vpop.f32.mrb[0].mxu0
    %v180 = vadd.f32 %v81, %v179
    %v181 = vpop.f32.mrb[0].mxu0
    %v182 = vpop.f32.mrb[0].mxu0
    %v183 = vadd.f32 %v82, %v182
    %v184 = vpop.f32.mrb[0].mxu0
    %185 = vmatprep.mubr.bf16.mxu0 0
    %186 = vmatmul.mubr.bf16.gmra.mrb[0].mxu0 %v94
    %v187 = vpop.f32.mrb[0].mxu0
    %v188 = vadd.f32 %v83, %v187
    %v189 = vpop.f32.mrb[0].mxu0
    %v190 = vpop.f32.mrb[0].mxu0
    %v191 = vadd.f32 %v84, %v190
    %v192 = vpop.f32.mrb[0].mxu0
    %193 = vdwg.mxu0
    %194 = vst [vmem:[#allocation8] sm:$0xff] %v180
    %195 = vst [vmem:[#allocation8 + $0x8] sm:$0xff] %v183
    %196 = vst [vmem:[#allocation8 + $0x10] sm:$0xff] %v188
    %197 = vst [vmem:[#allocation8 + $0x18] sm:$0xff] %v191
    // Predicated region
    $region26: #{vision_embedding_forward.1} parent=1 // pred_check
      _
    $region27: #{vision_embedding_forward.1} parent=1 // pred_check_branch
      %199 = sbr.rel (0) target = $region29
    $region28: #{vision_embedding_forward.1} parent=1 // pred_region
      %s201 = ssub.s32 512, 512
      %202 = vsyncadd [#allocation4], %s201
      %s203 = sshll.u32 [#allocation8], 4
      %s204 = int_to_ptr.vmem [resolvable:$true] %s203
      %209 = dma.vmem_to_hbm [thread:$0]  %s204, 512, %s3, [#allocation4], 128, 128, 8
    $region29: #{vision_embedding_forward.1} parent=1 // pred_fallthru
      _
    // Predicated region
    $region30: #{vision_embedding_forward.1} parent=1 // pred_check
      _
    $region31: #{vision_embedding_forward.1} parent=1 // pred_check_branch
      %211 = sbr.rel (0) target = $region33
    $region32: #{vision_embedding_forward.1} parent=1 // pred_region
      %212 = dma.done [#allocation4], 512
    $region33: #{vision_embedding_forward.1} parent=1 // pred_fallthru
      _
    %213 = vsyncpa [#allocation3], 1
    %214 = vsyncpa [#allocation6], 1
    %215 = vsyncpa [#allocation4], 1

</llo_original>
